<compile_context>
chip_gen: v7x
topology: tpu7x:2x2x1
jax: 0.10.0
libtpu: 0.0.40
codegen_flags: <defaults>
</compile_context>

<pallas_src>
import jax
import jax.numpy as jnp
from jax import lax
from jax.experimental import pallas as pl
from jax.experimental.pallas import tpu as pltpu


def _make_lstm_predictor_kernel(T, Bp):
    """Builds the single-call LSTM + Linear + residual kernel for static T, Bp."""

    def kernel(x_ref, wih_ref, whh_ref, wp_ref, bias_ref, o_ref):
        # x_ref:    [T*Bp, F] f32  time-major, batch-padded features (row = t*Bp + b)
        # wih_ref:  [F, 4H]   f32  W_ih^T   (PyTorch gate order i|f|g|o)
        # whh_ref:  [H, 4H]   f32  W_hh^T
        # wp_ref:   [H, K]    f32  W_pred^T
        # bias_ref: [2, 4H]   f32  row 0 = b_ih + b_hh, row 1 = b_pred zero-padded to 4H
        # o_ref:    [Bp, K]   f32
        H, G = whh_ref.shape                      # G == 4*H
        K = wp_ref.shape[1]

        # Hoist every weight / bias read out of the recurrence (loaded once).
        wih = wih_ref[...]
        whh = whh_ref[...]
        wp = wp_ref[...]
        b_gates = bias_ref[0:1, :]                # [1, 4H]
        b_pred = bias_ref[1:2, 0:K]               # [1, K]

        # Input projection for ALL timesteps in one MXU pass (off the serial chain):
        #   gx[t*Bp + b, :] = x_t[b] @ W_ih^T + (b_ih + b_hh)
        gx = jnp.dot(x_ref[...], wih, preferred_element_type=jnp.float32) + b_gates

        # Single-tanh gate trick: sigmoid(x) = 0.5*(tanh(0.5*x) + 1).
        # Lane masks pick the tanh lanes (g gate) vs sigmoid lanes (i, f, o), so each
        # step needs ONE EUP push for all four gates; the muls/adds ride the VPU.
        lane = lax.broadcasted_iota(jnp.int32, (1, G), 1)
        is_g = (lane >= 2 * H) & (lane < 3 * H)
        pre_scale = jnp.where(is_g, 1.0, 0.5)     # [1, 4H] f32
        post_scale = pre_scale                    # 1.0 for g, 0.5 for i/f/o
        post_shift = jnp.where(is_g, 0.0, 0.5)

        def lstm_cell(gates, c_prev):
            act = jnp.tanh(gates * pre_scale) * post_scale + post_shift  # [Bp, 4H]
            i_g = act[:, 0:H]
            f_g = act[:, H:2 * H]
            g_g = act[:, 2 * H:3 * H]
            o_g = act[:, 3 * H:4 * H]
            c_new = f_g * c_prev + i_g * g_g
            h_new = o_g * jnp.tanh(c_new)
            return h_new, c_new

        # t = 0: h0 = c0 = 0, so the recurrent matmul is skipped entirely.
        c0 = jnp.zeros((Bp, H), jnp.float32)
        h, c = lstm_cell(gx[0:Bp, :], c0)

        # Remaining steps, fully unrolled (T is a small static trip count) so the
        # LLO scheduler can interleave MXU / EUP / VPU work across steps; h / c stay
        # in vregs, each step's gx slab is exactly one aligned (8, 128) vreg.
        for t in range(1, T):
            gates = gx[t * Bp:(t + 1) * Bp, :] + jnp.dot(
                h, whh, preferred_element_type=jnp.float32)
            h, c = lstm_cell(gates, c)

        # Prediction head + residual with the last-step features (F == K).
        pred = jnp.dot(h, wp, preferred_element_type=jnp.float32) + b_pred
        x_last = x_ref[(T - 1) * Bp:T * Bp, :]    # [Bp, F], F == K
        o_ref[...] = pred + x_last

    return kernel


def lstm_predictor(features, params):
    """features: [B, T, F] float32  ->  [B, tagset_size] float32."""
    B, T, F = features.shape
    H = params["w_hh_t"].shape[0]
    K = params["w_pred_t"].shape[1]
    assert F == K, "residual `pred + features[:, -1]` requires num_features == tagset_size"
    assert K <= 4 * H, "bias packing requires tagset_size <= 4*hidden_dim"

    Bp = ((B + 7) // 8) * 8                       # pad batch to a full sublane tile

    # Tiny layout prep (< 2 KiB): time-major + batch-pad + flatten so the whole
    # input projection is a single in-kernel matmul and each step's gate slab is
    # one aligned (8, 128) tile.  XLA fuses these into one small copy.
    x_tm = jnp.transpose(features, (1, 0, 2))                 # [T, B, F]
    x_tm = jnp.pad(x_tm, ((0, 0), (0, Bp - B), (0, 0)))       # [T, Bp, F]
    x2d = x_tm.reshape(T * Bp, F)                             # [T*Bp, F]

    vmem = pl.BlockSpec(memory_space=pltpu.MemorySpace.VMEM)
    out = pl.pallas_call(
        _make_lstm_predictor_kernel(T, Bp),
        out_shape=jax.ShapeDtypeStruct((Bp, K), jnp.float32),
        in_specs=[vmem] * 5,
        out_specs=vmem,
    )(x2d,
      params["w_ih_t"],
      params["w_hh_t"],
      params["w_pred_t"],
      params["bias_pack"])
    return out[:B]


def init_params(key, num_features, hidden_dim, tagset_size):
    """Deterministic init matching nn.LSTM / nn.Linear parameter shapes."""
    H = hidden_dim
    k_lstm = 1.0 / jnp.sqrt(H)
    k_lin = 1.0 / jnp.sqrt(H)
    ks = jax.random.split(key, 6)
    w_ih = jax.random.uniform(ks[0], (4 * H, num_features), jnp.float32,
                              -k_lstm, k_lstm)
    w_hh = jax.random.uniform(ks[1], (4 * H, H), jnp.float32, -k_lstm, k_lstm)
    b_ih = jax.random.uniform(ks[2], (4 * H,), jnp.float32, -k_lstm, k_lstm)
    b_hh = jax.random.uniform(ks[3], (4 * H,), jnp.float32, -k_lstm, k_lstm)
    w_pred = jax.random.uniform(ks[4], (tagset_size, H), jnp.float32,
                                -k_lin, k_lin)
    b_pred = jax.random.uniform(ks[5], (tagset_size,), jnp.float32,
                                -k_lin, k_lin)
    # Pack both biases into one (8,128)-tile-sized input: row 0 = fused gate bias,
    # row 1 = prediction bias zero-padded to 4H lanes.
    bias_pack = jnp.stack([b_ih + b_hh,
                           jnp.pad(b_pred, (0, 4 * H - tagset_size))])
    return {
        "w_ih_t": w_ih.T,          # [F, 4H]
        "w_hh_t": w_hh.T,          # [H, 4H]
        "w_pred_t": w_pred.T,      # [H, K]
        "bias_pack": bias_pack,    # [2, 4H]
    }


def reference_forward(features, params):
    """Pure-JAX f32 reference of the same forward, for a sanity check."""
    B, T, F = features.shape
    H = params["w_hh_t"].shape[0]
    K = params["w_pred_t"].shape[1]
    b_gates = params["bias_pack"][0:1, :]
    b_pred = params["bias_pack"][1:2, :K]
    h = jnp.zeros((B, H), jnp.float32)
    c = jnp.zeros((B, H), jnp.float32)
    for t in range(T):
        g = (features[:, t, :] @ params["w_ih_t"]
             + h @ params["w_hh_t"] + b_gates)
        i = jax.nn.sigmoid(g[:, 0:H])
        f = jax.nn.sigmoid(g[:, H:2 * H])
        gg = jnp.tanh(g[:, 2 * H:3 * H])
        o = jax.nn.sigmoid(g[:, 3 * H:4 * H])
        c = f * c + i * gg
        h = o * jnp.tanh(c)
    pred = h @ params["w_pred_t"] + b_pred
    return pred + features[:, -1, :]


if __name__ == "__main__":
    # Small shapes consistent with the module: tagset_size=6 forces F=6.
    B, T, F, H, K = 2, 8, 6, 32, 6
    key = jax.random.PRNGKey(0)
    k_x, k_p = jax.random.split(key)
    features = jax.random.normal(k_x, (B, T, F), jnp.float32)
    params = init_params(k_p, F, H, K)

    fwd = jax.jit(lstm_predictor)
    out = jax.block_until_ready(fwd(features, params))

    ref = reference_forward(features, params)
    assert out.shape == (B, K)
    # All matmul operands are f32 now (f32 accumulation on the MXU), so the
    # tolerance is tighter than the previous bf16-operand version.
    assert jnp.allclose(out, ref, atol=1e-2, rtol=1e-2), (
        f"max abs err {jnp.max(jnp.abs(out - ref))}")
    print("KERNEL_OK")
</pallas_src>

<mosaic_0001>
module attributes {stable_mosaic.version = 11 : i64} {
  func.func @kernel(%arg0: memref<64x6xf32, #tpu.memory_space<vmem>>, %arg1: memref<6x128xf32, #tpu.memory_space<vmem>>, %arg2: memref<32x128xf32, #tpu.memory_space<vmem>>, %arg3: memref<32x6xf32, #tpu.memory_space<vmem>>, %arg4: memref<2x128xf32, #tpu.memory_space<vmem>>, %arg5: memref<8x6xf32, #tpu.memory_space<vmem>>) attributes {dimension_semantics = [], scalar_prefetch = 0 : i64, scratch_operands = 0 : i64, tpu.core_type = #tpu.core_type<tc>} {
    %c0 = arith.constant 0 : index
    %c0_0 = arith.constant 0 : index
    %0 = vector.load %arg1[%c0, %c0_0] : memref<6x128xf32, #tpu.memory_space<vmem>>, vector<6x128xf32>
    %c0_1 = arith.constant 0 : index
    %c0_2 = arith.constant 0 : index
    %1 = vector.load %arg2[%c0_1, %c0_2] : memref<32x128xf32, #tpu.memory_space<vmem>>, vector<32x128xf32>
    %c0_3 = arith.constant 0 : index
    %c0_4 = arith.constant 0 : index
    %2 = vector.load %arg3[%c0_3, %c0_4] : memref<32x6xf32, #tpu.memory_space<vmem>>, vector<32x6xf32>
    %c0_5 = arith.constant 0 : index
    %c0_6 = arith.constant 0 : index
    %3 = vector.load %arg4[%c0_5, %c0_6] : memref<2x128xf32, #tpu.memory_space<vmem>>, vector<1x128xf32>
    %c1 = arith.constant 1 : index
    %c0_7 = arith.constant 0 : index
    %4 = vector.load %arg4[%c1, %c0_7] : memref<2x128xf32, #tpu.memory_space<vmem>>, vector<1x6xf32>
    %c0_8 = arith.constant 0 : index
    %c0_9 = arith.constant 0 : index
    %5 = vector.load %arg0[%c0_8, %c0_9] : memref<64x6xf32, #tpu.memory_space<vmem>>, vector<64x6xf32>
    %cst = arith.constant dense<0.000000e+00> : vector<64x128xf32>
    %6 = tpu.matmul %5, %0, %cst {dimension_numbers = #tpu.dot_dimension_numbers<[1], [0], [0], [1], [0, 0, 1, 1], [], []>} : vector<64x6xf32>, vector<6x128xf32>, vector<64x128xf32> -> vector<64x128xf32>
    %7 = vector.broadcast %3 : vector<1x128xf32> to vector<64x128xf32>
    %8 = arith.addf %6, %7 : vector<64x128xf32>
    %9 = tpu.iota {dimensions = array<i32: 1>} : vector<1x128xi32>
    %c64_i32 = arith.constant 64 : i32
    %10 = vector.broadcast %c64_i32 : i32 to vector<1x128xi32>
    %11 = arith.cmpi sge, %9, %10 : vector<1x128xi32>
    %c96_i32 = arith.constant 96 : i32
    %12 = vector.broadcast %c96_i32 : i32 to vector<1x128xi32>
    %13 = arith.cmpi slt, %9, %12 : vector<1x128xi32>
    %14 = arith.andi %11, %13 : vector<1x128xi1>
    %cst_10 = arith.constant 1.000000e+00 : f32
    %cst_11 = arith.constant 5.000000e-01 : f32
    %15 = vector.broadcast %cst_10 : f32 to vector<1x128xf32>
    %16 = vector.broadcast %cst_11 : f32 to vector<1x128xf32>
    %17 = arith.select %14, %15, %16 : vector<1x128xi1>, vector<1x128xf32>
    %cst_12 = arith.constant 0.000000e+00 : f32
    %cst_13 = arith.constant 5.000000e-01 : f32
    %18 = vector.broadcast %cst_12 : f32 to vector<1x128xf32>
    %19 = vector.broadcast %cst_13 : f32 to vector<1x128xf32>
    %20 = arith.select %14, %18, %19 : vector<1x128xi1>, vector<1x128xf32>
    %cst_14 = arith.constant 0.000000e+00 : f32
    %21 = vector.broadcast %cst_14 : f32 to vector<8x32xf32>
    %22 = vector.extract_strided_slice %8 {offsets = [0, 0], sizes = [8, 128], strides = [1, 1]} : vector<64x128xf32> to vector<8x128xf32>
    %23 = vector.broadcast %17 : vector<1x128xf32> to vector<8x128xf32>
    %24 = arith.mulf %22, %23 : vector<8x128xf32>
    %25 = math.tanh %24 : vector<8x128xf32>
    %26 = vector.broadcast %17 : vector<1x128xf32> to vector<8x128xf32>
    %27 = arith.mulf %25, %26 : vector<8x128xf32>
    %28 = vector.broadcast %20 : vector<1x128xf32> to vector<8x128xf32>
    %29 = arith.addf %27, %28 : vector<8x128xf32>
    %30 = vector.extract_strided_slice %29 {offsets = [0, 0], sizes = [8, 32], strides = [1, 1]} : vector<8x128xf32> to vector<8x32xf32>
    %31 = vector.extract_strided_slice %29 {offsets = [0, 32], sizes = [8, 32], strides = [1, 1]} : vector<8x128xf32> to vector<8x32xf32>
    %32 = vector.extract_strided_slice %29 {offsets = [0, 64], sizes = [8, 32], strides = [1, 1]} : vector<8x128xf32> to vector<8x32xf32>
    %33 = vector.extract_strided_slice %29 {offsets = [0, 96], sizes = [8, 32], strides = [1, 1]} : vector<8x128xf32> to vector<8x32xf32>
    %34 = arith.mulf %31, %21 : vector<8x32xf32>
    %35 = arith.mulf %30, %32 : vector<8x32xf32>
    %36 = arith.addf %34, %35 : vector<8x32xf32>
    %37 = math.tanh %36 : vector<8x32xf32>
    %38 = arith.mulf %33, %37 : vector<8x32xf32>
    %39 = vector.extract_strided_slice %8 {offsets = [8, 0], sizes = [8, 128], strides = [1, 1]} : vector<64x128xf32> to vector<8x128xf32>
    %cst_15 = arith.constant dense<0.000000e+00> : vector<8x128xf32>
    %40 = tpu.matmul %38, %1, %cst_15 {dimension_numbers = #tpu.dot_dimension_numbers<[1], [0], [0], [1], [0, 0, 1, 1], [], []>} : vector<8x32xf32>, vector<32x128xf32>, vector<8x128xf32> -> vector<8x128xf32>
    %41 = arith.addf %39, %40 : vector<8x128xf32>
    %42 = vector.broadcast %17 : vector<1x128xf32> to vector<8x128xf32>
    %43 = arith.mulf %41, %42 : vector<8x128xf32>
    %44 = math.tanh %43 : vector<8x128xf32>
    %45 = vector.broadcast %17 : vector<1x128xf32> to vector<8x128xf32>
    %46 = arith.mulf %44, %45 : vector<8x128xf32>
    %47 = vector.broadcast %20 : vector<1x128xf32> to vector<8x128xf32>
    %48 = arith.addf %46, %47 : vector<8x128xf32>
    %49 = vector.extract_strided_slice %48 {offsets = [0, 0], sizes = [8, 32], strides = [1, 1]} : vector<8x128xf32> to vector<8x32xf32>
    %50 = vector.extract_strided_slice %48 {offsets = [0, 32], sizes = [8, 32], strides = [1, 1]} : vector<8x128xf32> to vector<8x32xf32>
    %51 = vector.extract_strided_slice %48 {offsets = [0, 64], sizes = [8, 32], strides = [1, 1]} : vector<8x128xf32> to vector<8x32xf32>
    %52 = vector.extract_strided_slice %48 {offsets = [0, 96], sizes = [8, 32], strides = [1, 1]} : vector<8x128xf32> to vector<8x32xf32>
    %53 = arith.mulf %50, %36 : vector<8x32xf32>
    %54 = arith.mulf %49, %51 : vector<8x32xf32>
    %55 = arith.addf %53, %54 : vector<8x32xf32>
    %56 = math.tanh %55 : vector<8x32xf32>
    %57 = arith.mulf %52, %56 : vector<8x32xf32>
    %58 = vector.extract_strided_slice %8 {offsets = [16, 0], sizes = [8, 128], strides = [1, 1]} : vector<64x128xf32> to vector<8x128xf32>
    %cst_16 = arith.constant dense<0.000000e+00> : vector<8x128xf32>
    %59 = tpu.matmul %57, %1, %cst_16 {dimension_numbers = #tpu.dot_dimension_numbers<[1], [0], [0], [1], [0, 0, 1, 1], [], []>} : vector<8x32xf32>, vector<32x128xf32>, vector<8x128xf32> -> vector<8x128xf32>
    %60 = arith.addf %58, %59 : vector<8x128xf32>
    %61 = vector.broadcast %17 : vector<1x128xf32> to vector<8x128xf32>
    %62 = arith.mulf %60, %61 : vector<8x128xf32>
    %63 = math.tanh %62 : vector<8x128xf32>
    %64 = vector.broadcast %17 : vector<1x128xf32> to vector<8x128xf32>
    %65 = arith.mulf %63, %64 : vector<8x128xf32>
    %66 = vector.broadcast %20 : vector<1x128xf32> to vector<8x128xf32>
    %67 = arith.addf %65, %66 : vector<8x128xf32>
    %68 = vector.extract_strided_slice %67 {offsets = [0, 0], sizes = [8, 32], strides = [1, 1]} : vector<8x128xf32> to vector<8x32xf32>
    %69 = vector.extract_strided_slice %67 {offsets = [0, 32], sizes = [8, 32], strides = [1, 1]} : vector<8x128xf32> to vector<8x32xf32>
    %70 = vector.extract_strided_slice %67 {offsets = [0, 64], sizes = [8, 32], strides = [1, 1]} : vector<8x128xf32> to vector<8x32xf32>
    %71 = vector.extract_strided_slice %67 {offsets = [0, 96], sizes = [8, 32], strides = [1, 1]} : vector<8x128xf32> to vector<8x32xf32>
    %72 = arith.mulf %69, %55 : vector<8x32xf32>
    %73 = arith.mulf %68, %70 : vector<8x32xf32>
    %74 = arith.addf %72, %73 : vector<8x32xf32>
    %75 = math.tanh %74 : vector<8x32xf32>
    %76 = arith.mulf %71, %75 : vector<8x32xf32>
    %77 = vector.extract_strided_slice %8 {offsets = [24, 0], sizes = [8, 128], strides = [1, 1]} : vector<64x128xf32> to vector<8x128xf32>
    %cst_17 = arith.constant dense<0.000000e+00> : vector<8x128xf32>
    %78 = tpu.matmul %76, %1, %cst_17 {dimension_numbers = #tpu.dot_dimension_numbers<[1], [0], [0], [1], [0, 0, 1, 1], [], []>} : vector<8x32xf32>, vector<32x128xf32>, vector<8x128xf32> -> vector<8x128xf32>
    %79 = arith.addf %77, %78 : vector<8x128xf32>
    %80 = vector.broadcast %17 : vector<1x128xf32> to vector<8x128xf32>
    %81 = arith.mulf %79, %80 : vector<8x128xf32>
    %82 = math.tanh %81 : vector<8x128xf32>
    %83 = vector.broadcast %17 : vector<1x128xf32> to vector<8x128xf32>
    %84 = arith.mulf %82, %83 : vector<8x128xf32>
    %85 = vector.broadcast %20 : vector<1x128xf32> to vector<8x128xf32>
    %86 = arith.addf %84, %85 : vector<8x128xf32>
    %87 = vector.extract_strided_slice %86 {offsets = [0, 0], sizes = [8, 32], strides = [1, 1]} : vector<8x128xf32> to vector<8x32xf32>
    %88 = vector.extract_strided_slice %86 {offsets = [0, 32], sizes = [8, 32], strides = [1, 1]} : vector<8x128xf32> to vector<8x32xf32>
    %89 = vector.extract_strided_slice %86 {offsets = [0, 64], sizes = [8, 32], strides = [1, 1]} : vector<8x128xf32> to vector<8x32xf32>
    %90 = vector.extract_strided_slice %86 {offsets = [0, 96], sizes = [8, 32], strides = [1, 1]} : vector<8x128xf32> to vector<8x32xf32>
    %91 = arith.mulf %88, %74 : vector<8x32xf32>
    %92 = arith.mulf %87, %89 : vector<8x32xf32>
    %93 = arith.addf %91, %92 : vector<8x32xf32>
    %94 = math.tanh %93 : vector<8x32xf32>
    %95 = arith.mulf %90, %94 : vector<8x32xf32>
    %96 = vector.extract_strided_slice %8 {offsets = [32, 0], sizes = [8, 128], strides = [1, 1]} : vector<64x128xf32> to vector<8x128xf32>
    %cst_18 = arith.constant dense<0.000000e+00> : vector<8x128xf32>
    %97 = tpu.matmul %95, %1, %cst_18 {dimension_numbers = #tpu.dot_dimension_numbers<[1], [0], [0], [1], [0, 0, 1, 1], [], []>} : vector<8x32xf32>, vector<32x128xf32>, vector<8x128xf32> -> vector<8x128xf32>
    %98 = arith.addf %96, %97 : vector<8x128xf32>
    %99 = vector.broadcast %17 : vector<1x128xf32> to vector<8x128xf32>
    %100 = arith.mulf %98, %99 : vector<8x128xf32>
    %101 = math.tanh %100 : vector<8x128xf32>
    %102 = vector.broadcast %17 : vector<1x128xf32> to vector<8x128xf32>
    %103 = arith.mulf %101, %102 : vector<8x128xf32>
    %104 = vector.broadcast %20 : vector<1x128xf32> to vector<8x128xf32>
    %105 = arith.addf %103, %104 : vector<8x128xf32>
    %106 = vector.extract_strided_slice %105 {offsets = [0, 0], sizes = [8, 32], strides = [1, 1]} : vector<8x128xf32> to vector<8x32xf32>
    %107 = vector.extract_strided_slice %105 {offsets = [0, 32], sizes = [8, 32], strides = [1, 1]} : vector<8x128xf32> to vector<8x32xf32>
    %108 = vector.extract_strided_slice %105 {offsets = [0, 64], sizes = [8, 32], strides = [1, 1]} : vector<8x128xf32> to vector<8x32xf32>
    %109 = vector.extract_strided_slice %105 {offsets = [0, 96], sizes = [8, 32], strides = [1, 1]} : vector<8x128xf32> to vector<8x32xf32>
    %110 = arith.mulf %107, %93 : vector<8x32xf32>
    %111 = arith.mulf %106, %108 : vector<8x32xf32>
    %112 = arith.addf %110, %111 : vector<8x32xf32>
    %113 = math.tanh %112 : vector<8x32xf32>
    %114 = arith.mulf %109, %113 : vector<8x32xf32>
    %115 = vector.extract_strided_slice %8 {offsets = [40, 0], sizes = [8, 128], strides = [1, 1]} : vector<64x128xf32> to vector<8x128xf32>
    %cst_19 = arith.constant dense<0.000000e+00> : vector<8x128xf32>
    %116 = tpu.matmul %114, %1, %cst_19 {dimension_numbers = #tpu.dot_dimension_numbers<[1], [0], [0], [1], [0, 0, 1, 1], [], []>} : vector<8x32xf32>, vector<32x128xf32>, vector<8x128xf32> -> vector<8x128xf32>
    %117 = arith.addf %115, %116 : vector<8x128xf32>
    %118 = vector.broadcast %17 : vector<1x128xf32> to vector<8x128xf32>
    %119 = arith.mulf %117, %118 : vector<8x128xf32>
    %120 = math.tanh %119 : vector<8x128xf32>
    %121 = vector.broadcast %17 : vector<1x128xf32> to vector<8x128xf32>
    %122 = arith.mulf %120, %121 : vector<8x128xf32>
    %123 = vector.broadcast %20 : vector<1x128xf32> to vector<8x128xf32>
    %124 = arith.addf %122, %123 : vector<8x128xf32>
    %125 = vector.extract_strided_slice %124 {offsets = [0, 0], sizes = [8, 32], strides = [1, 1]} : vector<8x128xf32> to vector<8x32xf32>
    %126 = vector.extract_strided_slice %124 {offsets = [0, 32], sizes = [8, 32], strides = [1, 1]} : vector<8x128xf32> to vector<8x32xf32>
    %127 = vector.extract_strided_slice %124 {offsets = [0, 64], sizes = [8, 32], strides = [1, 1]} : vector<8x128xf32> to vector<8x32xf32>
    %128 = vector.extract_strided_slice %124 {offsets = [0, 96], sizes = [8, 32], strides = [1, 1]} : vector<8x128xf32> to vector<8x32xf32>
    %129 = arith.mulf %126, %112 : vector<8x32xf32>
    %130 = arith.mulf %125, %127 : vector<8x32xf32>
    %131 = arith.addf %129, %130 : vector<8x32xf32>
    %132 = math.tanh %131 : vector<8x32xf32>
    %133 = arith.mulf %128, %132 : vector<8x32xf32>
    %134 = vector.extract_strided_slice %8 {offsets = [48, 0], sizes = [8, 128], strides = [1, 1]} : vector<64x128xf32> to vector<8x128xf32>
    %cst_20 = arith.constant dense<0.000000e+00> : vector<8x128xf32>
    %135 = tpu.matmul %133, %1, %cst_20 {dimension_numbers = #tpu.dot_dimension_numbers<[1], [0], [0], [1], [0, 0, 1, 1], [], []>} : vector<8x32xf32>, vector<32x128xf32>, vector<8x128xf32> -> vector<8x128xf32>
    %136 = arith.addf %134, %135 : vector<8x128xf32>
    %137 = vector.broadcast %17 : vector<1x128xf32> to vector<8x128xf32>
    %138 = arith.mulf %136, %137 : vector<8x128xf32>
    %139 = math.tanh %138 : vector<8x128xf32>
    %140 = vector.broadcast %17 : vector<1x128xf32> to vector<8x128xf32>
    %141 = arith.mulf %139, %140 : vector<8x128xf32>
    %142 = vector.broadcast %20 : vector<1x128xf32> to vector<8x128xf32>
    %143 = arith.addf %141, %142 : vector<8x128xf32>
    %144 = vector.extract_strided_slice %143 {offsets = [0, 0], sizes = [8, 32], strides = [1, 1]} : vector<8x128xf32> to vector<8x32xf32>
    %145 = vector.extract_strided_slice %143 {offsets = [0, 32], sizes = [8, 32], strides = [1, 1]} : vector<8x128xf32> to vector<8x32xf32>
    %146 = vector.extract_strided_slice %143 {offsets = [0, 64], sizes = [8, 32], strides = [1, 1]} : vector<8x128xf32> to vector<8x32xf32>
    %147 = vector.extract_strided_slice %143 {offsets = [0, 96], sizes = [8, 32], strides = [1, 1]} : vector<8x128xf32> to vector<8x32xf32>
    %148 = arith.mulf %145, %131 : vector<8x32xf32>
    %149 = arith.mulf %144, %146 : vector<8x32xf32>
    %150 = arith.addf %148, %149 : vector<8x32xf32>
    %151 = math.tanh %150 : vector<8x32xf32>
    %152 = arith.mulf %147, %151 : vector<8x32xf32>
    %153 = vector.extract_strided_slice %8 {offsets = [56, 0], sizes = [8, 128], strides = [1, 1]} : vector<64x128xf32> to vector<8x128xf32>
    %cst_21 = arith.constant dense<0.000000e+00> : vector<8x128xf32>
    %154 = tpu.matmul %152, %1, %cst_21 {dimension_numbers = #tpu.dot_dimension_numbers<[1], [0], [0], [1], [0, 0, 1, 1], [], []>} : vector<8x32xf32>, vector<32x128xf32>, vector<8x128xf32> -> vector<8x128xf32>
    %155 = arith.addf %153, %154 : vector<8x128xf32>
    %156 = vector.broadcast %17 : vector<1x128xf32> to vector<8x128xf32>
    %157 = arith.mulf %155, %156 : vector<8x128xf32>
    %158 = math.tanh %157 : vector<8x128xf32>
    %159 = vector.broadcast %17 : vector<1x128xf32> to vector<8x128xf32>
    %160 = arith.mulf %158, %159 : vector<8x128xf32>
    %161 = vector.broadcast %20 : vector<1x128xf32> to vector<8x128xf32>
    %162 = arith.addf %160, %161 : vector<8x128xf32>
    %163 = vector.extract_strided_slice %162 {offsets = [0, 0], sizes = [8, 32], strides = [1, 1]} : vector<8x128xf32> to vector<8x32xf32>
    %164 = vector.extract_strided_slice %162 {offsets = [0, 32], sizes = [8, 32], strides = [1, 1]} : vector<8x128xf32> to vector<8x32xf32>
    %165 = vector.extract_strided_slice %162 {offsets = [0, 64], sizes = [8, 32], strides = [1, 1]} : vector<8x128xf32> to vector<8x32xf32>
    %166 = vector.extract_strided_slice %162 {offsets = [0, 96], sizes = [8, 32], strides = [1, 1]} : vector<8x128xf32> to vector<8x32xf32>
    %167 = arith.mulf %164, %150 : vector<8x32xf32>
    %168 = arith.mulf %163, %165 : vector<8x32xf32>
    %169 = arith.addf %167, %168 : vector<8x32xf32>
    %170 = math.tanh %169 : vector<8x32xf32>
    %171 = arith.mulf %166, %170 : vector<8x32xf32>
    %cst_22 = arith.constant dense<0.000000e+00> : vector<8x6xf32>
    %172 = tpu.matmul %171, %2, %cst_22 {dimension_numbers = #tpu.dot_dimension_numbers<[1], [0], [0], [1], [0, 0, 1, 1], [], []>} : vector<8x32xf32>, vector<32x6xf32>, vector<8x6xf32> -> vector<8x6xf32>
    %173 = vector.broadcast %4 : vector<1x6xf32> to vector<8x6xf32>
    %174 = arith.addf %172, %173 : vector<8x6xf32>
    %c56 = arith.constant 56 : index
    %c0_23 = arith.constant 0 : index
    %175 = vector.load %arg0[%c56, %c0_23] : memref<64x6xf32, #tpu.memory_space<vmem>>, vector<8x6xf32>
    %176 = arith.addf %174, %175 : vector<8x6xf32>
    %c0_24 = arith.constant 0 : index
    %c0_25 = arith.constant 0 : index
    %177 = vector.load %arg5[%c0_24, %c0_25] : memref<8x6xf32, #tpu.memory_space<vmem>>, vector<8x6xf32>
    tpu.vector_store %arg5[%c0_24, %c0_25], %176 {strides = array<i32>} : memref<8x6xf32, #tpu.memory_space<vmem>>, vector<8x6xf32>,
    return
  }
}

</mosaic_0001>

<llo_original>
// kernel: lstm_predictor.1
$region0: #{lstm_predictor.1}
  #allocation0 [shape = 'u32[]', space=smem, size = 0x4, offset = 0x4, fixed_abs, tag = 'smem constant byte address 0x4 - core index']
  #allocation1 [shape = 'u32[144,128]{1,0:T(1,128)}', space=vmem, size = 0x12000, scoped, tag = 'internal scratch']
  %s0 = inlined_call_operand.vmem [shape: f32[64,6], index: 0, kind: input, shape index: {}]
  %s1 = inlined_call_operand.vmem [shape: f32[6,128], index: 1, kind: input, shape index: {}]
  %s2 = inlined_call_operand.vmem [shape: f32[32,128], index: 2, kind: input, shape index: {}]
  %s3 = inlined_call_operand.vmem [shape: f32[32,6], index: 3, kind: input, shape index: {}]
  %s4 = inlined_call_operand.vmem [shape: f32[2,128], index: 4, kind: input, shape index: {}]
  %s5 = inlined_call_operand.vmem [shape: f32[8,6], index: 5, kind: output, shape index: {}]
  %s6 = sld [smem:[#allocation0]]
  $region30: #{lstm_predictor.1} parent=0
    _
  %s8 = ssub.s32 1, %s6
  %s9 = scalar_select 0, %s8, %s6
  // Predicated region
  $region2: #{lstm_predictor.1} parent=0 // pred_check
    _
  $region3: #{lstm_predictor.1} parent=0 // pred_check_branch
    %11 = sbr.rel (0) target = $region5
  $region4: #{lstm_predictor.1} parent=0 // pred_region
    _
  $region5: #{lstm_predictor.1} parent=0 // pred_fallthru
    _
  // Predicated region
  $region6: #{lstm_predictor.1} parent=0 // pred_check
    _
  $region7: #{lstm_predictor.1} parent=0 // pred_check_branch
    %13 = sbr.rel (0) target = $region9
  $region8: #{lstm_predictor.1} parent=0 // pred_region
    _
  $region9: #{lstm_predictor.1} parent=0 // pred_fallthru
    _
  // Predicated region
  $region10: #{lstm_predictor.1} parent=0 // pred_check
    _
  $region11: #{lstm_predictor.1} parent=0 // pred_check_branch
    %15 = sbr.rel (0) target = $region13
  $region12: #{lstm_predictor.1} parent=0 // pred_region
    _
  $region13: #{lstm_predictor.1} parent=0 // pred_fallthru
    _
  // Predicated region
  $region14: #{lstm_predictor.1} parent=0 // pred_check
    _
  $region15: #{lstm_predictor.1} parent=0 // pred_check_branch
    %17 = sbr.rel (0) target = $region17
  $region16: #{lstm_predictor.1} parent=0 // pred_region
    _
  $region17: #{lstm_predictor.1} parent=0 // pred_fallthru
    _
  // Predicated region
  $region18: #{lstm_predictor.1} parent=0 // pred_check
    _
  $region19: #{lstm_predictor.1} parent=0 // pred_check_branch
    %19 = sbr.rel (0) target = $region21
  $region20: #{lstm_predictor.1} parent=0 // pred_region
    _
  $region21: #{lstm_predictor.1} parent=0 // pred_fallthru
    _
  %v20 = vld [vmem:[%s1] sm:$0x3f]
  %v21 = vld [vmem:[%s2] sm:$0xff]
  %v22 = vld [vmem:[%s2 + $0x8] sm:$0xff]
  %v23 = vld [vmem:[%s2 + $0x10] sm:$0xff]
  %v24 = vld [vmem:[%s2 + $0x18] sm:$0xff]
  %v25 = vld [vmem:[%s3] sm:$0xff]
  %v26 = vld [vmem:[%s3 + $0x8] sm:$0xff]
  %v27 = vld [vmem:[%s3 + $0x10] sm:$0xff]
  %v28 = vld [vmem:[%s3 + $0x18] sm:$0xff]
  %v29 = vld [vmem:[%s4] sm:$0x1]
  %v30 = vld [vmem:[%s4 + $0x1] sm:$0x1]
  %v31 = vld [vmem:[%s0] sm:$0xff]
  %v32 = vld [vmem:[%s0 + $0x8] sm:$0xff]
  %v33 = vld [vmem:[%s0 + $0x10] sm:$0xff]
  %v34 = vld [vmem:[%s0 + $0x18] sm:$0xff]
  %v35 = vld [vmem:[%s0 + $0x20] sm:$0xff]
  %v36 = vld [vmem:[%s0 + $0x28] sm:$0xff]
  %v37 = vld [vmem:[%s0 + $0x30] sm:$0xff]
  %v38 = vld [vmem:[%s0 + $0x38] sm:$0xff]
  %v39 = vlaneseq
  %v40 = vshrl.u32 %v39, 7
  %v41 = vsub.s32 0, %v40
  %v42 = vrot.slane %v29, %v41
  %vm43 = vcmask 48128
  %v45 = vsel %vm43, %v31, 0
  %v48 = vsel %vm43, %v32, 0
  %v51 = vsel %vm43, %v33, 0
  %v54 = vsel %vm43, %v34, 0
  %v57 = vsel %vm43, %v35, 0
  %v60 = vsel %vm43, %v36, 0
  %v63 = vsel %vm43, %v37, 0
  %v66 = vsel %vm43, %v38, 0
  %vm68 = vcmask 1045504
  %v70 = vsel %vm68, %v20, 0
  %72 = vmatprep.subr.mxu0 0.0
  %73 = vmatpush1.msra.mxu0 %v70
  %74 = vmatprep.subr.mxu0 0.0
  %75 = vmatpush1.msra.mxu0 0.0
  %76 = vmatprep.subr.mxu0 0.0
  %77 = vmatpush1.msra.mxu0 0.0
  %78 = vmatprep.subr.mxu0 0.0
  %79 = vmatpush1.msra.mxu0 0.0
  %80 = vmatprep.subr.mxu0 0.0
  %81 = vmatpush1.msra.mxu0 0.0
  %82 = vmatprep.subr.mxu0 0.0
  %83 = vmatpush1.msra.mxu0 0.0
  %84 = vmatprep.subr.mxu0 0.0
  %85 = vmatpush1.msra.mxu0 0.0
  %86 = vmatprep.subr.mxu0 0.0
  %87 = vmatpush1.msra.mxu0 0.0
  %88 = vmatprep.subr.mxu0 0.0
  %89 = vmatpush1.msra.mxu0 0.0
  %90 = vmatprep.subr.mxu0 0.0
  %91 = vmatpush1.msra.mxu0 0.0
  %92 = vmatprep.subr.mxu0 0.0
  %93 = vmatpush1.msra.mxu0 0.0
  %94 = vmatprep.subr.mxu0 0.0
  %95 = vmatpush1.msra.mxu0 0.0
  %96 = vmatprep.subr.mxu0 0.0
  %97 = vmatpush1.msra.mxu0 0.0
  %98 = vmatprep.subr.mxu0 0.0
  %99 = vmatpush1.msra.mxu0 0.0
  %100 = vmatprep.subr.mxu0 0.0
  %101 = vmatpush1.msra.mxu0 0.0
  %102 = vmatprep.subr.mxu0 0.0
  %103 = vmatpush1.msra.mxu0 0.0
  %104 = vmatprep.subr.mxu0 0.0
  %105 = vmatpush1.msra.mxu0 0.0
  %106 = vmatprep.subr.mxu0 0.0
  %107 = vmatpush1.msra.mxu0 0.0
  %108 = vmatprep.subr.mxu0 0.0
  %109 = vmatpush1.msra.mxu0 0.0
  %110 = vmatprep.subr.mxu0 0.0
  %111 = vmatpush1.msra.mxu0 0.0
  %112 = vmatprep.subr.mxu0 0.0
  %113 = vmatpush1.msra.mxu0 0.0
  %114 = vmatprep.subr.mxu0 0.0
  %115 = vmatpush1.msra.mxu0 0.0
  %116 = vmatprep.subr.mxu0 0.0
  %117 = vmatpush1.msra.mxu0 0.0
  %118 = vmatprep.subr.mxu0 0.0
  %119 = vmatpush1.msra.mxu0 0.0
  %120 = vmatprep.subr.mxu0 0.0
  %121 = vmatpush1.msra.mxu0 0.0
  %122 = vmatprep.subr.mxu0 0.0
  %123 = vmatpush1.msra.mxu0 0.0
  %124 = vmatprep.subr.mxu0 0.0
  %125 = vmatpush1.msra.mxu0 0.0
  %126 = vmatprep.subr.mxu0 0.0
  %127 = vmatpush1.msra.mxu0 0.0
  %128 = vmatprep.subr.mxu0 0.0
  %129 = vmatpush1.msra.mxu0 0.0
  %130 = vmatprep.subr.mxu0 0.0
  %131 = vmatpush1.msra.mxu0 0.0
  %132 = vmatprep.subr.mxu0 0.0
  %133 = vmatpush1.msra.mxu0 0.0
  %134 = vmatprep.subr.mxu0 0.0
  %135 = vmatpush1.msra.mxu0 0.0
  %136 = vmatprep.mubr.f32.mxu0 0.0
  %137 = vmatmul.mubr.f32.gmra.mrb[0].mxu0 %v45
  %v138 = vpop.f32.mrb[0].mxu0
  %v139 = vadd.f32 %v42, %v138
  %v140 = vpop.f32.mrb[0].mxu0
  %141 = vmatprep.mubr.f32.mxu0 0.0
  %142 = vmatmul.mubr.f32.gmra.mrb[0].mxu0 %v48
  %v143 = vpop.f32.mrb[0].mxu0
  %v144 = vadd.f32 %v42, %v143
  %v145 = vpop.f32.mrb[0].mxu0
  %146 = vmatprep.mubr.f32.mxu0 0.0
  %147 = vmatmul.mubr.f32.gmra.mrb[0].mxu0 %v51
  %v148 = vpop.f32.mrb[0].mxu0
  %v149 = vadd.f32 %v42, %v148
  %v150 = vpop.f32.mrb[0].mxu0
  %151 = vmatprep.mubr.f32.mxu0 0.0
  %152 = vmatmul.mubr.f32.gmra.mrb[0].mxu0 %v54
  %v153 = vpop.f32.mrb[0].mxu0
  %v154 = vadd.f32 %v42, %v153
  %v155 = vpop.f32.mrb[0].mxu0
  %156 = vmatprep.mubr.f32.mxu0 0.0
  %157 = vmatmul.mubr.f32.gmra.mrb[0].mxu0 %v57
  %v158 = vpop.f32.mrb[0].mxu0
  %v159 = vadd.f32 %v42, %v158
  %v160 = vpop.f32.mrb[0].mxu0
  %161 = vmatprep.mubr.f32.mxu0 0.0
  %162 = vmatmul.mubr.f32.gmra.mrb[0].mxu0 %v60
  %v163 = vpop.f32.mrb[0].mxu0
  %v164 = vadd.f32 %v42, %v163
  %v165 = vpop.f32.mrb[0].mxu0
  %166 = vmatprep.mubr.f32.mxu0 0.0
  %167 = vmatmul.mubr.f32.gmra.mrb[0].mxu0 %v63
  %v168 = vpop.f32.mrb[0].mxu0
  %v169 = vadd.f32 %v42, %v168
  %v170 = vpop.f32.mrb[0].mxu0
  %171 = vmatprep.mubr.f32.mxu0 0.0
  %172 = vmatmul.mubr.f32.gmra.mrb[0].mxu0 %v66
  %v173 = vpop.f32.mrb[0].mxu0
  %v174 = vadd.f32 %v42, %v173
  %v175 = vpop.f32.mrb[0].mxu0
  %176 = vdwg.mxu0
  %v177 = vlaneseq
  %v178 = vand.u32 %v177, 127
  %vm179 = vcmp.ge.s32.totalorder %v178, 64
  %vm180 = vcmp.lt.s32.totalorder %v178, 96
  %vm181 = vmand %vm179, %vm180
  %v182 = vsel %vm181, 1.0, 0.5
  %v183 = vsel %vm181, 0.0, 0.5
  %v184 = vmul.f32 %v139, %v182
  %v185 = vtanh.pop %v184
  %v186 = vmul.f32 %v185, %v182
  %v187 = vadd.f32 %v186, %v183
  %v188 = vmul.f32 %v187, 0.0
  %190 = vrot.lane.b32.xlu0 %v187, 64
  %v191 = vpop.permute.xlu0 %190
  %v193 = vmul.f32 %v187, %v191
  %195 = vrot.lane.b32.xlu0 %v193, 32
  %v196 = vpop.permute.xlu0 %195
  %v198 = vadd.f32 %v188, %v196
  %v199 = vtanh.pop %v198
  %201 = vrot.lane.b32.xlu0 %v199, 64
  %v202 = vpop.permute.xlu0 %201
  %v204 = vmul.f32 %v187, %v202
  %206 = vrot.lane.b32.xlu0 %v204, 32
  %v207 = vpop.permute.xlu0 %206
  %vm208 = vcmask 261120
  %v209 = vsel %vm208, %v207, 0
  %211 = vmatprep.subr.mxu0 0.0
  %212 = vmatpush1.msra.mxu0 %v21
  %213 = vmatprep.subr.mxu0 0.0
  %214 = vmatpush1.msra.mxu0 %v22
  %215 = vmatprep.subr.mxu0 0.0
  %216 = vmatpush1.msra.mxu0 %v23
  %217 = vmatprep.subr.mxu0 0.0
  %218 = vmatpush1.msra.mxu0 %v24
  %219 = vmatprep.subr.mxu0 0.0
  %220 = vmatpush1.msra.mxu0 0.0
  %221 = vmatprep.subr.mxu0 0.0
  %222 = vmatpush1.msra.mxu0 0.0
  %223 = vmatprep.subr.mxu0 0.0
  %224 = vmatpush1.msra.mxu0 0.0
  %225 = vmatprep.subr.mxu0 0.0
  %226 = vmatpush1.msra.mxu0 0.0
  %227 = vmatprep.subr.mxu0 0.0
  %228 = vmatpush1.msra.mxu0 0.0
  %229 = vmatprep.subr.mxu0 0.0
  %230 = vmatpush1.msra.mxu0 0.0
  %231 = vmatprep.subr.mxu0 0.0
  %232 = vmatpush1.msra.mxu0 0.0
  %233 = vmatprep.subr.mxu0 0.0
  %234 = vmatpush1.msra.mxu0 0.0
  %235 = vmatprep.subr.mxu0 0.0
  %236 = vmatpush1.msra.mxu0 0.0
  %237 = vmatprep.subr.mxu0 0.0
  %238 = vmatpush1.msra.mxu0 0.0
  %239 = vmatprep.subr.mxu0 0.0
  %240 = vmatpush1.msra.mxu0 0.0
  %241 = vmatprep.subr.mxu0 0.0
  %242 = vmatpush1.msra.mxu0 0.0
  %243 = vmatprep.subr.mxu0 0.0
  %244 = vmatpush1.msra.mxu0 0.0
  %245 = vmatprep.subr.mxu0 0.0
  %246 = vmatpush1.msra.mxu0 0.0
  %247 = vmatprep.subr.mxu0 0.0
  %248 = vmatpush1.msra.mxu0 0.0
  %249 = vmatprep.subr.mxu0 0.0
  %250 = vmatpush1.msra.mxu0 0.0
  %251 = vmatprep.subr.mxu0 0.0
  %252 = vmatpush1.msra.mxu0 0.0
  %253 = vmatprep.subr.mxu0 0.0
  %254 = vmatpush1.msra.mxu0 0.0
  %255 = vmatprep.subr.mxu0 0.0
  %256 = vmatpush1.msra.mxu0 0.0
  %257 = vmatprep.subr.mxu0 0.0
  %258 = vmatpush1.msra.mxu0 0.0
  %259 = vmatprep.subr.mxu0 0.0
  %260 = vmatpush1.msra.mxu0 0.0
  %261 = vmatprep.subr.mxu0 0.0
  %262 = vmatpush1.msra.mxu0 0.0
  %263 = vmatprep.subr.mxu0 0.0
  %264 = vmatpush1.msra.mxu0 0.0
  %265 = vmatprep.subr.mxu0 0.0
  %266 = vmatpush1.msra.mxu0 0.0
  %267 = vmatprep.subr.mxu0 0.0
  %268 = vmatpush1.msra.mxu0 0.0
  %269 = vmatprep.subr.mxu0 0.0
  %270 = vmatpush1.msra.mxu0 0.0
  %271 = vmatprep.subr.mxu0 0.0
  %272 = vmatpush1.msra.mxu0 0.0
  %273 = vmatprep.subr.mxu0 0.0
  %274 = vmatpush1.msra.mxu0 0.0
  %275 = vmatprep.mubr.f32.mxu0 0.0
  %276 = vmatmul.mubr.f32.gmra.mrb[0].mxu0 %v209
  %v277 = vpop.f32.mrb[0].mxu0
  %v278 = vadd.f32 0.0, %v277
  %v279 = vpop.f32.mrb[0].mxu0
  %280 = vdwg.mxu0
  %v281 = vadd.f32 %v144, %v278
  %v282 = vmul.f32 %v281, %v182
  %v283 = vtanh.pop %v282
  %v284 = vmul.f32 %v283, %v182
  %v285 = vadd.f32 %v284, %v183
  %v286 = vmul.f32 %v285, %v198
  %288 = vrot.lane.b32.xlu0 %v285, 64
  %v289 = vpop.permute.xlu0 %288
  %v291 = vmul.f32 %v285, %v289
  %293 = vrot.lane.b32.xlu0 %v291, 32
  %v294 = vpop.permute.xlu0 %293
  %v296 = vadd.f32 %v286, %v294
  %v297 = vtanh.pop %v296
  %299 = vrot.lane.b32.xlu0 %v297, 64
  %v300 = vpop.permute.xlu0 %299
  %v302 = vmul.f32 %v285, %v300
  %304 = vrot.lane.b32.xlu0 %v302, 32
  %v305 = vpop.permute.xlu0 %304
  %v306 = vsel %vm208, %v305, 0
  %308 = vmatprep.subr.mxu0 0.0
  %309 = vmatpush1.msra.mxu0 %v21
  %310 = vmatprep.subr.mxu0 0.0
  %311 = vmatpush1.msra.mxu0 %v22
  %312 = vmatprep.subr.mxu0 0.0
  %313 = vmatpush1.msra.mxu0 %v23
  %314 = vmatprep.subr.mxu0 0.0
  %315 = vmatpush1.msra.mxu0 %v24
  %316 = vmatprep.subr.mxu0 0.0
  %317 = vmatpush1.msra.mxu0 0.0
  %318 = vmatprep.subr.mxu0 0.0
  %319 = vmatpush1.msra.mxu0 0.0
  %320 = vmatprep.subr.mxu0 0.0
  %321 = vmatpush1.msra.mxu0 0.0
  %322 = vmatprep.subr.mxu0 0.0
  %323 = vmatpush1.msra.mxu0 0.0
  %324 = vmatprep.subr.mxu0 0.0
  %325 = vmatpush1.msra.mxu0 0.0
  %326 = vmatprep.subr.mxu0 0.0
  %327 = vmatpush1.msra.mxu0 0.0
  %328 = vmatprep.subr.mxu0 0.0
  %329 = vmatpush1.msra.mxu0 0.0
  %330 = vmatprep.subr.mxu0 0.0
  %331 = vmatpush1.msra.mxu0 0.0
  %332 = vmatprep.subr.mxu0 0.0
  %333 = vmatpush1.msra.mxu0 0.0
  %334 = vmatprep.subr.mxu0 0.0
  %335 = vmatpush1.msra.mxu0 0.0
  %336 = vmatprep.subr.mxu0 0.0
  %337 = vmatpush1.msra.mxu0 0.0
  %338 = vmatprep.subr.mxu0 0.0
  %339 = vmatpush1.msra.mxu0 0.0
  %340 = vmatprep.subr.mxu0 0.0
  %341 = vmatpush1.msra.mxu0 0.0
  %342 = vmatprep.subr.mxu0 0.0
  %343 = vmatpush1.msra.mxu0 0.0
  %344 = vmatprep.subr.mxu0 0.0
  %345 = vmatpush1.msra.mxu0 0.0
  %346 = vmatprep.subr.mxu0 0.0
  %347 = vmatpush1.msra.mxu0 0.0
  %348 = vmatprep.subr.mxu0 0.0
  %349 = vmatpush1.msra.mxu0 0.0
  %350 = vmatprep.subr.mxu0 0.0
  %351 = vmatpush1.msra.mxu0 0.0
  %352 = vmatprep.subr.mxu0 0.0
  %353 = vmatpush1.msra.mxu0 0.0
  %354 = vmatprep.subr.mxu0 0.0
  %355 = vmatpush1.msra.mxu0 0.0
  %356 = vmatprep.subr.mxu0 0.0
  %357 = vmatpush1.msra.mxu0 0.0
  %358 = vmatprep.subr.mxu0 0.0
  %359 = vmatpush1.msra.mxu0 0.0
  %360 = vmatprep.subr.mxu0 0.0
  %361 = vmatpush1.msra.mxu0 0.0
  %362 = vmatprep.subr.mxu0 0.0
  %363 = vmatpush1.msra.mxu0 0.0
  %364 = vmatprep.subr.mxu0 0.0
  %365 = vmatpush1.msra.mxu0 0.0
  %366 = vmatprep.subr.mxu0 0.0
  %367 = vmatpush1.msra.mxu0 0.0
  %368 = vmatprep.subr.mxu0 0.0
  %369 = vmatpush1.msra.mxu0 0.0
  %370 = vmatprep.subr.mxu0 0.0
  %371 = vmatpush1.msra.mxu0 0.0
  %372 = vmatprep.mubr.f32.mxu0 0.0
  %373 = vmatmul.mubr.f32.gmra.mrb[0].mxu0 %v306
  %v374 = vpop.f32.mrb[0].mxu0
  %v375 = vadd.f32 0.0, %v374
  %v376 = vpop.f32.mrb[0].mxu0
  %377 = vdwg.mxu0
  %v378 = vadd.f32 %v149, %v375
  %v379 = vmul.f32 %v378, %v182
  %v380 = vtanh.pop %v379
  %v381 = vmul.f32 %v380, %v182
  %v382 = vadd.f32 %v381, %v183
  %v383 = vmul.f32 %v382, %v296
  %385 = vrot.lane.b32.xlu0 %v382, 64
  %v386 = vpop.permute.xlu0 %385
  %v388 = vmul.f32 %v382, %v386
  %390 = vrot.lane.b32.xlu0 %v388, 32
  %v391 = vpop.permute.xlu0 %390
  %v393 = vadd.f32 %v383, %v391
  %v394 = vtanh.pop %v393
  %396 = vrot.lane.b32.xlu0 %v394, 64
  %v397 = vpop.permute.xlu0 %396
  %v399 = vmul.f32 %v382, %v397
  %401 = vrot.lane.b32.xlu0 %v399, 32
  %v402 = vpop.permute.xlu0 %401
  %v403 = vsel %vm208, %v402, 0
  %405 = vmatprep.subr.mxu0 0.0
  %406 = vmatpush1.msra.mxu0 %v21
  %407 = vmatprep.subr.mxu0 0.0
  %408 = vmatpush1.msra.mxu0 %v22
  %409 = vmatprep.subr.mxu0 0.0
  %410 = vmatpush1.msra.mxu0 %v23
  %411 = vmatprep.subr.mxu0 0.0
  %412 = vmatpush1.msra.mxu0 %v24
  %413 = vmatprep.subr.mxu0 0.0
  %414 = vmatpush1.msra.mxu0 0.0
  %415 = vmatprep.subr.mxu0 0.0
  %416 = vmatpush1.msra.mxu0 0.0
  %417 = vmatprep.subr.mxu0 0.0
  %418 = vmatpush1.msra.mxu0 0.0
  %419 = vmatprep.subr.mxu0 0.0
  %420 = vmatpush1.msra.mxu0 0.0
  %421 = vmatprep.subr.mxu0 0.0
  %422 = vmatpush1.msra.mxu0 0.0
  %423 = vmatprep.subr.mxu0 0.0
  %424 = vmatpush1.msra.mxu0 0.0
  %425 = vmatprep.subr.mxu0 0.0
  %426 = vmatpush1.msra.mxu0 0.0
  %427 = vmatprep.subr.mxu0 0.0
  %428 = vmatpush1.msra.mxu0 0.0
  %429 = vmatprep.subr.mxu0 0.0
  %430 = vmatpush1.msra.mxu0 0.0
  %431 = vmatprep.subr.mxu0 0.0
  %432 = vmatpush1.msra.mxu0 0.0
  %433 = vmatprep.subr.mxu0 0.0
  %434 = vmatpush1.msra.mxu0 0.0
  %435 = vmatprep.subr.mxu0 0.0
  %436 = vmatpush1.msra.mxu0 0.0
  %437 = vmatprep.subr.mxu0 0.0
  %438 = vmatpush1.msra.mxu0 0.0
  %439 = vmatprep.subr.mxu0 0.0
  %440 = vmatpush1.msra.mxu0 0.0
  %441 = vmatprep.subr.mxu0 0.0
  %442 = vmatpush1.msra.mxu0 0.0
  %443 = vmatprep.subr.mxu0 0.0
  %444 = vmatpush1.msra.mxu0 0.0
  %445 = vmatprep.subr.mxu0 0.0
  %446 = vmatpush1.msra.mxu0 0.0
  %447 = vmatprep.subr.mxu0 0.0
  %448 = vmatpush1.msra.mxu0 0.0
  %449 = vmatprep.subr.mxu0 0.0
  %450 = vmatpush1.msra.mxu0 0.0
  %451 = vmatprep.subr.mxu0 0.0
  %452 = vmatpush1.msra.mxu0 0.0
  %453 = vmatprep.subr.mxu0 0.0
  %454 = vmatpush1.msra.mxu0 0.0
  %455 = vmatprep.subr.mxu0 0.0
  %456 = vmatpush1.msra.mxu0 0.0
  %457 = vmatprep.subr.mxu0 0.0
  %458 = vmatpush1.msra.mxu0 0.0
  %459 = vmatprep.subr.mxu0 0.0
  %460 = vmatpush1.msra.mxu0 0.0
  %461 = vmatprep.subr.mxu0 0.0
  %462 = vmatpush1.msra.mxu0 0.0
  %463 = vmatprep.subr.mxu0 0.0
  %464 = vmatpush1.msra.mxu0 0.0
  %465 = vmatprep.subr.mxu0 0.0
  %466 = vmatpush1.msra.mxu0 0.0
  %467 = vmatprep.subr.mxu0 0.0
  %468 = vmatpush1.msra.mxu0 0.0
  %469 = vmatprep.mubr.f32.mxu0 0.0
  %470 = vmatmul.mubr.f32.gmra.mrb[0].mxu0 %v403
  %v471 = vpop.f32.mrb[0].mxu0
  %v472 = vadd.f32 0.0, %v471
  %v473 = vpop.f32.mrb[0].mxu0
  %474 = vdwg.mxu0
  %v475 = vadd.f32 %v154, %v472
  %v476 = vmul.f32 %v475, %v182
  %v477 = vtanh.pop %v476
  %v478 = vmul.f32 %v477, %v182
  %v479 = vadd.f32 %v478, %v183
  %v480 = vmul.f32 %v479, %v393
  %482 = vrot.lane.b32.xlu0 %v479, 64
  %v483 = vpop.permute.xlu0 %482
  %v485 = vmul.f32 %v479, %v483
  %487 = vrot.lane.b32.xlu0 %v485, 32
  %v488 = vpop.permute.xlu0 %487
  %v490 = vadd.f32 %v480, %v488
  %v491 = vtanh.pop %v490
  %493 = vrot.lane.b32.xlu0 %v491, 64
  %v494 = vpop.permute.xlu0 %493
  %v496 = vmul.f32 %v479, %v494
  %498 = vrot.lane.b32.xlu0 %v496, 32
  %v499 = vpop.permute.xlu0 %498
  %v500 = vsel %vm208, %v499, 0
  %502 = vmatprep.subr.mxu0 0.0
  %503 = vmatpush1.msra.mxu0 %v21
  %504 = vmatprep.subr.mxu0 0.0
  %505 = vmatpush1.msra.mxu0 %v22
  %506 = vmatprep.subr.mxu0 0.0
  %507 = vmatpush1.msra.mxu0 %v23
  %508 = vmatprep.subr.mxu0 0.0
  %509 = vmatpush1.msra.mxu0 %v24
  %510 = vmatprep.subr.mxu0 0.0
  %511 = vmatpush1.msra.mxu0 0.0
  %512 = vmatprep.subr.mxu0 0.0
  %513 = vmatpush1.msra.mxu0 0.0
  %514 = vmatprep.subr.mxu0 0.0
  %515 = vmatpush1.msra.mxu0 0.0
  %516 = vmatprep.subr.mxu0 0.0
  %517 = vmatpush1.msra.mxu0 0.0
  %518 = vmatprep.subr.mxu0 0.0
  %519 = vmatpush1.msra.mxu0 0.0
  %520 = vmatprep.subr.mxu0 0.0
  %521 = vmatpush1.msra.mxu0 0.0
  %522 = vmatprep.subr.mxu0 0.0
  %523 = vmatpush1.msra.mxu0 0.0
  %524 = vmatprep.subr.mxu0 0.0
  %525 = vmatpush1.msra.mxu0 0.0
  %526 = vmatprep.subr.mxu0 0.0
  %527 = vmatpush1.msra.mxu0 0.0
  %528 = vmatprep.subr.mxu0 0.0
  %529 = vmatpush1.msra.mxu0 0.0
  %530 = vmatprep.subr.mxu0 0.0
  %531 = vmatpush1.msra.mxu0 0.0
  %532 = vmatprep.subr.mxu0 0.0
  %533 = vmatpush1.msra.mxu0 0.0
  %534 = vmatprep.subr.mxu0 0.0
  %535 = vmatpush1.msra.mxu0 0.0
  %536 = vmatprep.subr.mxu0 0.0
  %537 = vmatpush1.msra.mxu0 0.0
  %538 = vmatprep.subr.mxu0 0.0
  %539 = vmatpush1.msra.mxu0 0.0
  %540 = vmatprep.subr.mxu0 0.0
  %541 = vmatpush1.msra.mxu0 0.0
  %542 = vmatprep.subr.mxu0 0.0
  %543 = vmatpush1.msra.mxu0 0.0
  %544 = vmatprep.subr.mxu0 0.0
  %545 = vmatpush1.msra.mxu0 0.0
  %546 = vmatprep.subr.mxu0 0.0
  %547 = vmatpush1.msra.mxu0 0.0
  %548 = vmatprep.subr.mxu0 0.0
  %549 = vmatpush1.msra.mxu0 0.0
  %550 = vmatprep.subr.mxu0 0.0
  %551 = vmatpush1.msra.mxu0 0.0
  %552 = vmatprep.subr.mxu0 0.0
  %553 = vmatpush1.msra.mxu0 0.0
  %554 = vmatprep.subr.mxu0 0.0
  %555 = vmatpush1.msra.mxu0 0.0
  %556 = vmatprep.subr.mxu0 0.0
  %557 = vmatpush1.msra.mxu0 0.0
  %558 = vmatprep.subr.mxu0 0.0
  %559 = vmatpush1.msra.mxu0 0.0
  %560 = vmatprep.subr.mxu0 0.0
  %561 = vmatpush1.msra.mxu0 0.0
  %562 = vmatprep.subr.mxu0 0.0
  %563 = vmatpush1.msra.mxu0 0.0
  %564 = vmatprep.subr.mxu0 0.0
  %565 = vmatpush1.msra.mxu0 0.0
  %566 = vmatprep.mubr.f32.mxu0 0.0
  %567 = vmatmul.mubr.f32.gmra.mrb[0].mxu0 %v500
  %v568 = vpop.f32.mrb[0].mxu0
  %v569 = vadd.f32 0.0, %v568
  %v570 = vpop.f32.mrb[0].mxu0
  %571 = vdwg.mxu0
  %v572 = vadd.f32 %v159, %v569
  %v573 = vmul.f32 %v572, %v182
  %v574 = vtanh.pop %v573
  %v575 = vmul.f32 %v574, %v182
  %v576 = vadd.f32 %v575, %v183
  %v577 = vmul.f32 %v576, %v490
  %579 = vrot.lane.b32.xlu0 %v576, 64
  %v580 = vpop.permute.xlu0 %579
  %v582 = vmul.f32 %v576, %v580
  %584 = vrot.lane.b32.xlu0 %v582, 32
  %v585 = vpop.permute.xlu0 %584
  %v587 = vadd.f32 %v577, %v585
  %v588 = vtanh.pop %v587
  %590 = vrot.lane.b32.xlu0 %v588, 64
  %v591 = vpop.permute.xlu0 %590
  %v593 = vmul.f32 %v576, %v591
  %595 = vrot.lane.b32.xlu0 %v593, 32
  %v596 = vpop.permute.xlu0 %595
  %v597 = vsel %vm208, %v596, 0
  %599 = vmatprep.subr.mxu0 0.0
  %600 = vmatpush1.msra.mxu0 %v21
  %601 = vmatprep.subr.mxu0 0.0
  %602 = vmatpush1.msra.mxu0 %v22
  %603 = vmatprep.subr.mxu0 0.0
  %604 = vmatpush1.msra.mxu0 %v23
  %605 = vmatprep.subr.mxu0 0.0
  %606 = vmatpush1.msra.mxu0 %v24
  %607 = vmatprep.subr.mxu0 0.0
  %608 = vmatpush1.msra.mxu0 0.0
  %609 = vmatprep.subr.mxu0 0.0
  %610 = vmatpush1.msra.mxu0 0.0
  %611 = vmatprep.subr.mxu0 0.0
  %612 = vmatpush1.msra.mxu0 0.0
  %613 = vmatprep.subr.mxu0 0.0
  %614 = vmatpush1.msra.mxu0 0.0
  %615 = vmatprep.subr.mxu0 0.0
  %616 = vmatpush1.msra.mxu0 0.0
  %617 = vmatprep.subr.mxu0 0.0
  %618 = vmatpush1.msra.mxu0 0.0
  %619 = vmatprep.subr.mxu0 0.0
  %620 = vmatpush1.msra.mxu0 0.0
  %621 = vmatprep.subr.mxu0 0.0
  %622 = vmatpush1.msra.mxu0 0.0
  %623 = vmatprep.subr.mxu0 0.0
  %624 = vmatpush1.msra.mxu0 0.0
  %625 = vmatprep.subr.mxu0 0.0
  %626 = vmatpush1.msra.mxu0 0.0
  %627 = vmatprep.subr.mxu0 0.0
  %628 = vmatpush1.msra.mxu0 0.0
  %629 = vmatprep.subr.mxu0 0.0
  %630 = vmatpush1.msra.mxu0 0.0
  %631 = vmatprep.subr.mxu0 0.0
  %632 = vmatpush1.msra.mxu0 0.0
  %633 = vmatprep.subr.mxu0 0.0
  %634 = vmatpush1.msra.mxu0 0.0
  %635 = vmatprep.subr.mxu0 0.0
  %636 = vmatpush1.msra.mxu0 0.0
  %637 = vmatprep.subr.mxu0 0.0
  %638 = vmatpush1.msra.mxu0 0.0
  %639 = vmatprep.subr.mxu0 0.0
  %640 = vmatpush1.msra.mxu0 0.0
  %641 = vmatprep.subr.mxu0 0.0
  %642 = vmatpush1.msra.mxu0 0.0
  %643 = vmatprep.subr.mxu0 0.0
  %644 = vmatpush1.msra.mxu0 0.0
  %645 = vmatprep.subr.mxu0 0.0
  %646 = vmatpush1.msra.mxu0 0.0
  %647 = vmatprep.subr.mxu0 0.0
  %648 = vmatpush1.msra.mxu0 0.0
  %649 = vmatprep.subr.mxu0 0.0
  %650 = vmatpush1.msra.mxu0 0.0
  %651 = vmatprep.subr.mxu0 0.0
  %652 = vmatpush1.msra.mxu0 0.0
  %653 = vmatprep.subr.mxu0 0.0
  %654 = vmatpush1.msra.mxu0 0.0
  %655 = vmatprep.subr.mxu0 0.0
  %656 = vmatpush1.msra.mxu0 0.0
  %657 = vmatprep.subr.mxu0 0.0
  %658 = vmatpush1.msra.mxu0 0.0
  %659 = vmatprep.subr.mxu0 0.0
  %660 = vmatpush1.msra.mxu0 0.0
  %661 = vmatprep.subr.mxu0 0.0
  %662 = vmatpush1.msra.mxu0 0.0
  %663 = vmatprep.mubr.f32.mxu0 0.0
  %664 = vmatmul.mubr.f32.gmra.mrb[0].mxu0 %v597
  %v665 = vpop.f32.mrb[0].mxu0
  %v666 = vadd.f32 0.0, %v665
  %v667 = vpop.f32.mrb[0].mxu0
  %668 = vdwg.mxu0
  %v669 = vadd.f32 %v164, %v666
  %v670 = vmul.f32 %v669, %v182
  %v671 = vtanh.pop %v670
  %v672 = vmul.f32 %v671, %v182
  %v673 = vadd.f32 %v672, %v183
  %v674 = vmul.f32 %v673, %v587
  %676 = vrot.lane.b32.xlu0 %v673, 64
  %v677 = vpop.permute.xlu0 %676
  %v679 = vmul.f32 %v673, %v677
  %681 = vrot.lane.b32.xlu0 %v679, 32
  %v682 = vpop.permute.xlu0 %681
  %v684 = vadd.f32 %v674, %v682
  %v685 = vtanh.pop %v684
  %687 = vrot.lane.b32.xlu0 %v685, 64
  %v688 = vpop.permute.xlu0 %687
  %v690 = vmul.f32 %v673, %v688
  %692 = vrot.lane.b32.xlu0 %v690, 32
  %v693 = vpop.permute.xlu0 %692
  %v694 = vsel %vm208, %v693, 0
  %696 = vmatprep.subr.mxu0 0.0
  %697 = vmatpush1.msra.mxu0 %v21
  %698 = vmatprep.subr.mxu0 0.0
  %699 = vmatpush1.msra.mxu0 %v22
  %700 = vmatprep.subr.mxu0 0.0
  %701 = vmatpush1.msra.mxu0 %v23
  %702 = vmatprep.subr.mxu0 0.0
  %703 = vmatpush1.msra.mxu0 %v24
  %704 = vmatprep.subr.mxu0 0.0
  %705 = vmatpush1.msra.mxu0 0.0
  %706 = vmatprep.subr.mxu0 0.0
  %707 = vmatpush1.msra.mxu0 0.0
  %708 = vmatprep.subr.mxu0 0.0
  %709 = vmatpush1.msra.mxu0 0.0
  %710 = vmatprep.subr.mxu0 0.0
  %711 = vmatpush1.msra.mxu0 0.0
  %712 = vmatprep.subr.mxu0 0.0
  %713 = vmatpush1.msra.mxu0 0.0
  %714 = vmatprep.subr.mxu0 0.0
  %715 = vmatpush1.msra.mxu0 0.0
  %716 = vmatprep.subr.mxu0 0.0
  %717 = vmatpush1.msra.mxu0 0.0
  %718 = vmatprep.subr.mxu0 0.0
  %719 = vmatpush1.msra.mxu0 0.0
  %720 = vmatprep.subr.mxu0 0.0
  %721 = vmatpush1.msra.mxu0 0.0
  %722 = vmatprep.subr.mxu0 0.0
  %723 = vmatpush1.msra.mxu0 0.0
  %724 = vmatprep.subr.mxu0 0.0
  %725 = vmatpush1.msra.mxu0 0.0
  %726 = vmatprep.subr.mxu0 0.0
  %727 = vmatpush1.msra.mxu0 0.0
  %728 = vmatprep.subr.mxu0 0.0
  %729 = vmatpush1.msra.mxu0 0.0
  %730 = vmatprep.subr.mxu0 0.0
  %731 = vmatpush1.msra.mxu0 0.0
  %732 = vmatprep.subr.mxu0 0.0
  %733 = vmatpush1.msra.mxu0 0.0
  %734 = vmatprep.subr.mxu0 0.0
  %735 = vmatpush1.msra.mxu0 0.0
  %736 = vmatprep.subr.mxu0 0.0
  %737 = vmatpush1.msra.mxu0 0.0
  %738 = vmatprep.subr.mxu0 0.0
  %739 = vmatpush1.msra.mxu0 0.0
  %740 = vmatprep.subr.mxu0 0.0
  %741 = vmatpush1.msra.mxu0 0.0
  %742 = vmatprep.subr.mxu0 0.0
  %743 = vmatpush1.msra.mxu0 0.0
  %744 = vmatprep.subr.mxu0 0.0
  %745 = vmatpush1.msra.mxu0 0.0
  %746 = vmatprep.subr.mxu0 0.0
  %747 = vmatpush1.msra.mxu0 0.0
  %748 = vmatprep.subr.mxu0 0.0
  %749 = vmatpush1.msra.mxu0 0.0
  %750 = vmatprep.subr.mxu0 0.0
  %751 = vmatpush1.msra.mxu0 0.0
  %752 = vmatprep.subr.mxu0 0.0
  %753 = vmatpush1.msra.mxu0 0.0
  %754 = vmatprep.subr.mxu0 0.0
  %755 = vmatpush1.msra.mxu0 0.0
  %756 = vmatprep.subr.mxu0 0.0
  %757 = vmatpush1.msra.mxu0 0.0
  %758 = vmatprep.subr.mxu0 0.0
  %759 = vmatpush1.msra.mxu0 0.0
  %760 = vmatprep.mubr.f32.mxu0 0.0
  %761 = vmatmul.mubr.f32.gmra.mrb[0].mxu0 %v694
  %v762 = vpop.f32.mrb[0].mxu0
  %v763 = vadd.f32 0.0, %v762
  %v764 = vpop.f32.mrb[0].mxu0
  %765 = vdwg.mxu0
  %v766 = vadd.f32 %v169, %v763
  %v767 = vmul.f32 %v766, %v182
  %v768 = vtanh.pop %v767
  %v769 = vmul.f32 %v768, %v182
  %v770 = vadd.f32 %v769, %v183
  %v771 = vmul.f32 %v770, %v684
  %773 = vrot.lane.b32.xlu0 %v770, 64
  %v774 = vpop.permute.xlu0 %773
  %v776 = vmul.f32 %v770, %v774
  %778 = vrot.lane.b32.xlu0 %v776, 32
  %v779 = vpop.permute.xlu0 %778
  %v781 = vadd.f32 %v771, %v779
  %v782 = vtanh.pop %v781
  %784 = vrot.lane.b32.xlu0 %v782, 64
  %v785 = vpop.permute.xlu0 %784
  %v787 = vmul.f32 %v770, %v785
  %789 = vrot.lane.b32.xlu0 %v787, 32
  %v790 = vpop.permute.xlu0 %789
  %v791 = vsel %vm208, %v790, 0
  %793 = vmatprep.subr.mxu0 0.0
  %794 = vmatpush1.msra.mxu0 %v21
  %795 = vmatprep.subr.mxu0 0.0
  %796 = vmatpush1.msra.mxu0 %v22
  %797 = vmatprep.subr.mxu0 0.0
  %798 = vmatpush1.msra.mxu0 %v23
  %799 = vmatprep.subr.mxu0 0.0
  %800 = vmatpush1.msra.mxu0 %v24
  %801 = vmatprep.subr.mxu0 0.0
  %802 = vmatpush1.msra.mxu0 0.0
  %803 = vmatprep.subr.mxu0 0.0
  %804 = vmatpush1.msra.mxu0 0.0
  %805 = vmatprep.subr.mxu0 0.0
  %806 = vmatpush1.msra.mxu0 0.0
  %807 = vmatprep.subr.mxu0 0.0
  %808 = vmatpush1.msra.mxu0 0.0
  %809 = vmatprep.subr.mxu0 0.0
  %810 = vmatpush1.msra.mxu0 0.0
  %811 = vmatprep.subr.mxu0 0.0
  %812 = vmatpush1.msra.mxu0 0.0
  %813 = vmatprep.subr.mxu0 0.0
  %814 = vmatpush1.msra.mxu0 0.0
  %815 = vmatprep.subr.mxu0 0.0
  %816 = vmatpush1.msra.mxu0 0.0
  %817 = vmatprep.subr.mxu0 0.0
  %818 = vmatpush1.msra.mxu0 0.0
  %819 = vmatprep.subr.mxu0 0.0
  %820 = vmatpush1.msra.mxu0 0.0
  %821 = vmatprep.subr.mxu0 0.0
  %822 = vmatpush1.msra.mxu0 0.0
  %823 = vmatprep.subr.mxu0 0.0
  %824 = vmatpush1.msra.mxu0 0.0
  %825 = vmatprep.subr.mxu0 0.0
  %826 = vmatpush1.msra.mxu0 0.0
  %827 = vmatprep.subr.mxu0 0.0
  %828 = vmatpush1.msra.mxu0 0.0
  %829 = vmatprep.subr.mxu0 0.0
  %830 = vmatpush1.msra.mxu0 0.0
  %831 = vmatprep.subr.mxu0 0.0
  %832 = vmatpush1.msra.mxu0 0.0
  %833 = vmatprep.subr.mxu0 0.0
  %834 = vmatpush1.msra.mxu0 0.0
  %835 = vmatprep.subr.mxu0 0.0
  %836 = vmatpush1.msra.mxu0 0.0
  %837 = vmatprep.subr.mxu0 0.0
  %838 = vmatpush1.msra.mxu0 0.0
  %839 = vmatprep.subr.mxu0 0.0
  %840 = vmatpush1.msra.mxu0 0.0
  %841 = vmatprep.subr.mxu0 0.0
  %842 = vmatpush1.msra.mxu0 0.0
  %843 = vmatprep.subr.mxu0 0.0
  %844 = vmatpush1.msra.mxu0 0.0
  %845 = vmatprep.subr.mxu0 0.0
  %846 = vmatpush1.msra.mxu0 0.0
  %847 = vmatprep.subr.mxu0 0.0
  %848 = vmatpush1.msra.mxu0 0.0
  %849 = vmatprep.subr.mxu0 0.0
  %850 = vmatpush1.msra.mxu0 0.0
  %851 = vmatprep.subr.mxu0 0.0
  %852 = vmatpush1.msra.mxu0 0.0
  %853 = vmatprep.subr.mxu0 0.0
  %854 = vmatpush1.msra.mxu0 0.0
  %855 = vmatprep.subr.mxu0 0.0
  %856 = vmatpush1.msra.mxu0 0.0
  %857 = vmatprep.mubr.f32.mxu0 0.0
  %858 = vmatmul.mubr.f32.gmra.mrb[0].mxu0 %v791
  %v859 = vpop.f32.mrb[0].mxu0
  %v860 = vadd.f32 0.0, %v859
  %v861 = vpop.f32.mrb[0].mxu0
  %862 = vdwg.mxu0
  %v863 = vadd.f32 %v174, %v860
  %v864 = vmul.f32 %v863, %v182
  %v865 = vtanh.pop %v864
  %v866 = vmul.f32 %v865, %v182
  %v867 = vadd.f32 %v866, %v183
  %v868 = vmul.f32 %v867, %v781
  %870 = vrot.lane.b32.xlu0 %v867, 64
  %v871 = vpop.permute.xlu0 %870
  %v873 = vmul.f32 %v867, %v871
  %875 = vrot.lane.b32.xlu0 %v873, 32
  %v876 = vpop.permute.xlu0 %875
  %v878 = vadd.f32 %v868, %v876
  %v879 = vtanh.pop %v878
  %881 = vrot.lane.b32.xlu0 %v879, 64
  %v882 = vpop.permute.xlu0 %881
  %v884 = vmul.f32 %v867, %v882
  %v885 = vlaneseq
  %v886 = vshrl.u32 %v885, 7
  %v887 = vsub.s32 0, %v886
  %v888 = vrot.slane %v30, %v887
  %890 = vrot.lane.b32.xlu0 %v884, 32
  %v891 = vpop.permute.xlu0 %890
  %v892 = vsel %vm208, %v891, 0
  %894 = vmatprep.subr.mxu0 0.0
  %895 = vmatpush1.msra.mxu0 %v25
  %896 = vmatprep.subr.mxu0 0.0
  %897 = vmatpush1.msra.mxu0 %v26
  %898 = vmatprep.subr.mxu0 0.0
  %899 = vmatpush1.msra.mxu0 %v27
  %900 = vmatprep.subr.mxu0 0.0
  %901 = vmatpush1.msra.mxu0 %v28
  %902 = vmatprep.subr.mxu0 0.0
  %903 = vmatpush1.msra.mxu0 0.0
  %904 = vmatprep.subr.mxu0 0.0
  %905 = vmatpush1.msra.mxu0 0.0
  %906 = vmatprep.subr.mxu0 0.0
  %907 = vmatpush1.msra.mxu0 0.0
  %908 = vmatprep.subr.mxu0 0.0
  %909 = vmatpush1.msra.mxu0 0.0
  %910 = vmatprep.subr.mxu0 0.0
  %911 = vmatpush1.msra.mxu0 0.0
  %912 = vmatprep.subr.mxu0 0.0
  %913 = vmatpush1.msra.mxu0 0.0
  %914 = vmatprep.subr.mxu0 0.0
  %915 = vmatpush1.msra.mxu0 0.0
  %916 = vmatprep.subr.mxu0 0.0
  %917 = vmatpush1.msra.mxu0 0.0
  %918 = vmatprep.subr.mxu0 0.0
  %919 = vmatpush1.msra.mxu0 0.0
  %920 = vmatprep.subr.mxu0 0.0
  %921 = vmatpush1.msra.mxu0 0.0
  %922 = vmatprep.subr.mxu0 0.0
  %923 = vmatpush1.msra.mxu0 0.0
  %924 = vmatprep.subr.mxu0 0.0
  %925 = vmatpush1.msra.mxu0 0.0
  %926 = vmatprep.subr.mxu0 0.0
  %927 = vmatpush1.msra.mxu0 0.0
  %928 = vmatprep.subr.mxu0 0.0
  %929 = vmatpush1.msra.mxu0 0.0
  %930 = vmatprep.subr.mxu0 0.0
  %931 = vmatpush1.msra.mxu0 0.0
  %932 = vmatprep.subr.mxu0 0.0
  %933 = vmatpush1.msra.mxu0 0.0
  %934 = vmatprep.subr.mxu0 0.0
  %935 = vmatpush1.msra.mxu0 0.0
  %936 = vmatprep.subr.mxu0 0.0
  %937 = vmatpush1.msra.mxu0 0.0
  %938 = vmatprep.subr.mxu0 0.0
  %939 = vmatpush1.msra.mxu0 0.0
  %940 = vmatprep.subr.mxu0 0.0
  %941 = vmatpush1.msra.mxu0 0.0
  %942 = vmatprep.subr.mxu0 0.0
  %943 = vmatpush1.msra.mxu0 0.0
  %944 = vmatprep.subr.mxu0 0.0
  %945 = vmatpush1.msra.mxu0 0.0
  %946 = vmatprep.subr.mxu0 0.0
  %947 = vmatpush1.msra.mxu0 0.0
  %948 = vmatprep.subr.mxu0 0.0
  %949 = vmatpush1.msra.mxu0 0.0
  %950 = vmatprep.subr.mxu0 0.0
  %951 = vmatpush1.msra.mxu0 0.0
  %952 = vmatprep.subr.mxu0 0.0
  %953 = vmatpush1.msra.mxu0 0.0
  %954 = vmatprep.subr.mxu0 0.0
  %955 = vmatpush1.msra.mxu0 0.0
  %956 = vmatprep.subr.mxu0 0.0
  %957 = vmatpush1.msra.mxu0 0.0
  %958 = vmatprep.mubr.f32.mxu0 0.0
  %959 = vmatmul.mubr.f32.gmra.mrb[0].mxu0 %v892
  %v960 = vpop.f32.mrb[0].mxu0
  %v961 = vadd.f32 %v888, %v960
  %v962 = vpop.f32.mrb[0].mxu0
  %963 = vdwg.mxu0
  %v964 = vadd.f32 %v961, %v38
  %965 = vst.msk [vmem:[%s5] sm:$0xff] %vm43, %v964
  // Predicated region
  $region22: #{lstm_predictor.1} parent=0 // pred_check
    _
  $region23: #{lstm_predictor.1} parent=0 // pred_check_branch
    %967 = sbr.rel (0) target = $region25
  $region24: #{lstm_predictor.1} parent=0 // pred_region
    _
  $region25: #{lstm_predictor.1} parent=0 // pred_fallthru
    _
  // Predicated region
  $region26: #{lstm_predictor.1} parent=0 // pred_check
    _
  $region27: #{lstm_predictor.1} parent=0 // pred_check_branch
    %969 = sbr.rel (0) target = $region29
  $region28: #{lstm_predictor.1} parent=0 // pred_region
    _
  $region29: #{lstm_predictor.1} parent=0 // pred_fallthru
    _

</llo_original>
